<compile_context>
chip_gen: v6e
topology: v6e:2x2x1
jax: 0.10.0
libtpu: 0.0.40
codegen_flags: <defaults>
</compile_context>

<pallas_src>
import functools

import jax
import jax.numpy as jnp
from jax.experimental import pallas as pl
from jax.experimental.pallas import tpu as pltpu


LANE = 128      # TPU lane width; batch is placed on the lane axis.
TILE_B = 512    # batch-tile width (lanes) once the batch is large enough to tile.


def toy_model_kernel(xT_ref, p_ref, oT_ref, *, f_in, h, o, pw):
    """Fused Linear -> ReLU -> Linear in transposed (batch-on-lanes) layout.

    xT_ref : (f_in, TB)   input activations, batch on lanes
    p_ref  : (h + o, pw)  packed parameter slab:
                            rows [0:h)   = [ W1 (h, f_in) | pad | b1 in last col ]
                            rows [h:h+o) = [ W2 (o, h)    | pad | b2 in last col ]
    oT_ref : (o, TB)      output, batch on lanes (lane-dense stores)
    """
    xT = xT_ref[...]
    w1 = p_ref[0:h, 0:f_in]              # (h, f_in)
    b1 = p_ref[0:h, pw - 1:pw]           # (h, 1) -> broadcasts over batch lanes
    w2 = p_ref[h:h + o, 0:h]             # (o, h)
    b2 = p_ref[h:h + o, pw - 1:pw]       # (o, 1)

    hid = jnp.dot(w1, xT, preferred_element_type=jnp.float32) + b1
    hid = jnp.maximum(hid, 0.0)          # ReLU on the VPU, f32
    y = jnp.dot(w2, hid, preferred_element_type=jnp.float32) + b2
    oT_ref[...] = y.astype(oT_ref.dtype)


def pack_params(w1, b1, w2, b2):
    """Pack PyTorch-layout params (weights [out, in], 1-D biases) into one f32 slab."""
    h, f_in = w1.shape
    o, h2 = w2.shape
    pw = max(f_in, h2) + 1
    slab = jnp.zeros((h + o, pw), jnp.float32)
    slab = slab.at[:h, :f_in].set(w1.astype(jnp.float32))
    slab = slab.at[:h, pw - 1].set(b1.astype(jnp.float32))
    slab = slab.at[h:h + o, :h2].set(w2.astype(jnp.float32))
    slab = slab.at[h:h + o, pw - 1].set(b2.astype(jnp.float32))
    return slab, pw


def toy_model_forward(x, w1, b1, w2, b2):
    """x: (B, 10). w1: (10, 10) [out, in], b1: (10,), w2: (5, 10) [out, in], b2: (5,).

    Computes relu(x @ w1.T + b1) @ w2.T + b2 (same semantics as the PyTorch module).
    """
    B, f_in = x.shape
    h = w1.shape[0]
    o = w2.shape[0]

    slab, pw = pack_params(w1, b1, w2, b2)

    # Batch goes on the lane axis; pad so stores are lane-dense (unmasked).
    if B <= TILE_B:
        Bp = max(LANE, -(-B // LANE) * LANE)
    else:
        Bp = -(-B // TILE_B) * TILE_B
    xT = jnp.zeros((f_in, Bp), x.dtype).at[:, :B].set(x.T)

    kernel = functools.partial(toy_model_kernel, f_in=f_in, h=h, o=o, pw=pw)
    out_shape = jax.ShapeDtypeStruct((o, Bp), x.dtype)

    if Bp <= TILE_B:
        # Small batch: no grid, whole arrays resident in VMEM.
        out_T = pl.pallas_call(
            kernel,
            out_shape=out_shape,
            in_specs=[
                pl.BlockSpec(memory_space=pltpu.MemorySpace.VMEM),
                pl.BlockSpec(memory_space=pltpu.MemorySpace.VMEM),
            ],
            out_specs=pl.BlockSpec(memory_space=pltpu.MemorySpace.VMEM),
        )(xT, slab)
    else:
        # Large batch: tile over batch lanes. Params use a constant index_map so
        # they stay resident across grid steps; the batch axis is "parallel".
        out_T = pl.pallas_call(
            kernel,
            out_shape=out_shape,
            grid=(Bp // TILE_B,),
            in_specs=[
                pl.BlockSpec((f_in, TILE_B), lambda i: (0, i)),
                pl.BlockSpec((h + o, pw), lambda i: (0, 0)),
            ],
            out_specs=pl.BlockSpec((o, TILE_B), lambda i: (0, i)),
            compiler_params=pltpu.CompilerParams(
                dimension_semantics=("parallel",),
            ),
        )(xT, slab)

    return out_T[:, :B].T


def _reference(x, w1, b1, w2, b2):
    return jnp.maximum(x @ w1.T + b1, 0.0) @ w2.T + b2


if __name__ == "__main__":
    key = jax.random.PRNGKey(0)
    k_x, k_w1, k_b1, k_w2, k_b2, k_x2 = jax.random.split(key, 6)

    # Linear(10, 10) -> ReLU -> Linear(10, 5)
    F_IN, H, O = 10, 10, 5

    # Deterministic synthetic parameters, stored in PyTorch layout [out, in].
    w1 = jax.random.normal(k_w1, (H, F_IN), dtype=jnp.float32) * 0.1
    b1 = jax.random.normal(k_b1, (H,), dtype=jnp.float32) * 0.1
    w2 = jax.random.normal(k_w2, (O, H), dtype=jnp.float32) * 0.1
    b2 = jax.random.normal(k_b2, (O,), dtype=jnp.float32) * 0.1

    # Small-batch (no-grid) path: one full lane of batch.
    B = 128
    x = jax.random.normal(k_x, (B, F_IN), dtype=jnp.float32)
    out = toy_model_forward(x, w1, b1, w2, b2)
    jax.block_until_ready(out)
    ref = _reference(x, w1, b1, w2, b2)
    assert out.shape == (B, O)
    assert jnp.allclose(out, ref, atol=1e-5, rtol=1e-5)

    # Non-multiple-of-128 batch exercises the lane padding.
    B2 = 3
    x2 = jax.random.normal(k_x2, (B2, F_IN), dtype=jnp.float32)
    out2 = toy_model_forward(x2, w1, b1, w2, b2)
    jax.block_until_ready(out2)
    ref2 = _reference(x2, w1, b1, w2, b2)
    assert out2.shape == (B2, O)
    assert jnp.allclose(out2, ref2, atol=1e-5, rtol=1e-5)

    print("KERNEL_OK")
</pallas_src>

<mosaic_0001>
module attributes {stable_mosaic.version = 11 : i64} {
  func.func @toy_model_kernel(%arg0: memref<10x128xf32, #tpu.memory_space<vmem>>, %arg1: memref<15x11xf32, #tpu.memory_space<vmem>>, %arg2: memref<5x128xf32, #tpu.memory_space<vmem>>) attributes {dimension_semantics = [], scalar_prefetch = 0 : i64, scratch_operands = 0 : i64, tpu.core_type = #tpu.core_type<tc>} {
    %c0 = arith.constant 0 : index
    %c0_0 = arith.constant 0 : index
    %0 = vector.load %arg0[%c0, %c0_0] : memref<10x128xf32, #tpu.memory_space<vmem>>, vector<10x128xf32>
    %c0_1 = arith.constant 0 : index
    %c0_2 = arith.constant 0 : index
    %1 = vector.load %arg1[%c0_1, %c0_2] : memref<15x11xf32, #tpu.memory_space<vmem>>, vector<10x10xf32>
    %c0_3 = arith.constant 0 : index
    %c10 = arith.constant 10 : index
    %2 = vector.load %arg1[%c0_3, %c10] : memref<15x11xf32, #tpu.memory_space<vmem>>, vector<10x1xf32>
    %c10_4 = arith.constant 10 : index
    %c0_5 = arith.constant 0 : index
    %3 = vector.load %arg1[%c10_4, %c0_5] : memref<15x11xf32, #tpu.memory_space<vmem>>, vector<5x10xf32>
    %c10_6 = arith.constant 10 : index
    %c10_7 = arith.constant 10 : index
    %4 = vector.load %arg1[%c10_6, %c10_7] : memref<15x11xf32, #tpu.memory_space<vmem>>, vector<5x1xf32>
    %cst = arith.constant dense<0.000000e+00> : vector<10x128xf32>
    %5 = tpu.matmul %1, %0, %cst {dimension_numbers = #tpu.dot_dimension_numbers<[1], [0], [0], [1], [0, 0, 1, 1], [], []>} : vector<10x10xf32>, vector<10x128xf32>, vector<10x128xf32> -> vector<10x128xf32>
    %6 = vector.broadcast %2 : vector<10x1xf32> to vector<10x128xf32>
    %7 = arith.addf %5, %6 : vector<10x128xf32>
    %cst_8 = arith.constant 0.000000e+00 : f32
    %8 = vector.broadcast %cst_8 : f32 to vector<10x128xf32>
    %9 = arith.maximumf %7, %8 : vector<10x128xf32>
    %cst_9 = arith.constant dense<0.000000e+00> : vector<5x128xf32>
    %10 = tpu.matmul %3, %9, %cst_9 {dimension_numbers = #tpu.dot_dimension_numbers<[1], [0], [0], [1], [0, 0, 1, 1], [], []>} : vector<5x10xf32>, vector<10x128xf32>, vector<5x128xf32> -> vector<5x128xf32>
    %11 = vector.broadcast %4 : vector<5x1xf32> to vector<5x128xf32>
    %12 = arith.addf %10, %11 : vector<5x128xf32>
    %c0_10 = arith.constant 0 : index
    %c0_11 = arith.constant 0 : index
    %13 = vector.load %arg2[%c0_10, %c0_11] : memref<5x128xf32, #tpu.memory_space<vmem>>, vector<5x128xf32>
    tpu.vector_store %arg2[%c0_10, %c0_11], %12 {strides = array<i32>} : memref<5x128xf32, #tpu.memory_space<vmem>>, vector<5x128xf32>,
    return
  }
}

</mosaic_0001>

<llo_original>
// kernel: tpu_custom_call.1
$region0: #{tpu_custom_call.1}
  #allocation0 [shape = 'u32[]', space=smem, size = 0x4, offset = 0x4, fixed_abs, tag = 'smem constant byte address 0x4 - core index']
  #allocation1 [shape = 'u32[144,128]{1,0:T(1,128)}', space=vmem, size = 0x12000, scoped, tag = 'internal scratch']
  %s0 = inlined_call_operand.hbm [shape: f32[10,128], index: 0, kind: input, shape index: {}]
  %s1 = inlined_call_operand.hbm [shape: f32[15,11], index: 1, kind: input, shape index: {}]
  %s2 = inlined_call_operand.hbm [shape: f32[5,128], index: 2, kind: output, shape index: {}]
  %s3 = sld [smem:[#allocation0]]
  $region26: #{tpu_custom_call.1} parent=0
    _
  %s5 = ssub.s32 1, %s3
  %s6 = scalar_select 0, %s5, %s3
  $region1: #{tpu_custom_call.1} parent=0
    #allocation2 [shape = 'u8[8192]{0}', space=vmem, size = 0x2000, scoped, tag = 'input window, operand 0, single buffered']
    #allocation3 [shape = 's32[1]{0}', space=sflag, size = 0x4, scoped, tag = 'scoped memory for tpu_custom_call.1']
    #allocation4 [shape = 's32[1]{0}', space=sflag, size = 0x4, scoped, tag = 'scoped memory for tpu_custom_call.1']
    #allocation5 [shape = 'u8[8192]{0}', space=vmem, size = 0x2000, scoped, tag = 'input window, operand 1, single buffered']
    #allocation6 [shape = 's32[1]{0}', space=sflag, size = 0x4, scoped, tag = 'scoped memory for tpu_custom_call.1']
    #allocation7 [shape = 'u8[4096]{0}', space=vmem, size = 0x1000, scoped, tag = 'output window, operand 0, single buffered']
    %7 = vsyncpa [#allocation3], 0
    %8 = vsyncpa [#allocation6], 0
    %9 = vsyncpa [#allocation4], 0
    // Predicated region
    $region2: #{tpu_custom_call.1} parent=1 // pred_check
      _
    $region3: #{tpu_custom_call.1} parent=1 // pred_check_branch
      %11 = sbr.rel (0) target = $region5
    $region4: #{tpu_custom_call.1} parent=1 // pred_region
      %s13 = ssub.s32 256, 256
      %14 = vsyncadd [#allocation3], %s13
      %s15 = sshll.u32 [#allocation2], 4
      %s16 = int_to_ptr.vmem [resolvable:$true] %s15
      %21 = dma.hbm_to_vmem [thread:$0]  %s0, 256, %s16, [#allocation3], 128, 128, 8
    $region5: #{tpu_custom_call.1} parent=1 // pred_fallthru
      _
    // Predicated region
    $region6: #{tpu_custom_call.1} parent=1 // pred_check
      _
    $region7: #{tpu_custom_call.1} parent=1 // pred_check_branch
      %23 = sbr.rel (0) target = $region9
    $region8: #{tpu_custom_call.1} parent=1 // pred_region
      %s25 = ssub.s32 256, 256
      %26 = vsyncadd [#allocation6], %s25
      %s27 = sshll.u32 [#allocation5], 4
      %s28 = int_to_ptr.vmem [resolvable:$true] %s27
      %33 = dma.hbm_to_vmem [thread:$0]  %s1, 256, %s28, [#allocation6], 128, 128, 8
    $region9: #{tpu_custom_call.1} parent=1 // pred_fallthru
      _
    // Predicated region
    $region10: #{tpu_custom_call.1} parent=1 // pred_check
      _
    $region11: #{tpu_custom_call.1} parent=1 // pred_check_branch
      %35 = sbr.rel (0) target = $region13
    $region12: #{tpu_custom_call.1} parent=1 // pred_region
      %36 = dma.done [#allocation3], 256
    $region13: #{tpu_custom_call.1} parent=1 // pred_fallthru
      _
    // Predicated region
    $region14: #{tpu_custom_call.1} parent=1 // pred_check
      _
    $region15: #{tpu_custom_call.1} parent=1 // pred_check_branch
      %38 = sbr.rel (0) target = $region17
    $region16: #{tpu_custom_call.1} parent=1 // pred_region
      %39 = dma.done [#allocation6], 256
    $region17: #{tpu_custom_call.1} parent=1 // pred_fallthru
      _
    %v40 = vld [vmem:[#allocation2] sm:$0xff]
    %v41 = vld [vmem:[#allocation2 + $0x8] sm:$0x3]
    %v42 = vld [vmem:[#allocation5] sm:$0xff]
    %v43 = vld [vmem:[#allocation5 + $0x8] sm:$0x3]
    %v44 = vld [vmem:[#allocation5 + $0xa] sm:$0x1f]
    %46 = vset.pattern.permute.xlu0 10
    %47 = vperm.xlu0 %46, %v42
    %v48 = vpop.permute.xlu0 %47
    %51 = vset.pattern.permute.xlu0 10
    %52 = vperm.xlu0 %51, %v43
    %v53 = vpop.permute.xlu0 %52
    %vm55 = vcmask 80896
    %v56 = vsel %vm55, %v42, 0
    %v58 = vsel %vm55, %v43, 0
    %vm60 = vcmask 1041408
    %v62 = vsel %vm60, %v41, 0
    %64 = vmatprep.subr.mxu0 0.0
    %65 = vmatpush1.msra.mxu0 0.0
    %66 = vmatprep.subr.mxu0 0.0
    %67 = vmatpush1.msra.mxu0 0.0
    %68 = vmatprep.subr.mxu0 0.0
    %69 = vmatpush1.msra.mxu0 0.0
    %70 = vmatprep.subr.mxu0 0.0
    %71 = vmatpush1.msra.mxu0 0.0
    %72 = vmatprep.subr.mxu0 0.0
    %73 = vmatpush1.msra.mxu0 0.0
    %74 = vmatprep.subr.mxu0 0.0
    %75 = vmatpush1.msra.mxu0 0.0
    %76 = vmatprep.subr.mxu0 0.0
    %77 = vmatpush1.msra.mxu0 0.0
    %78 = vmatprep.subr.mxu0 0.0
    %79 = vmatpush1.msra.mxu0 0.0
    %80 = vmatprep.subr.mxu0 0.0
    %81 = vmatpush1.msra.mxu0 0.0
    %82 = vmatprep.subr.mxu0 0.0
    %83 = vmatpush1.msra.mxu0 0.0
    %84 = vmatprep.subr.mxu0 0.0
    %85 = vmatpush1.msra.mxu0 0.0
    %86 = vmatprep.subr.mxu0 0.0
    %87 = vmatpush1.msra.mxu0 0.0
    %88 = vmatprep.subr.mxu0 0.0
    %89 = vmatpush1.msra.mxu0 0.0
    %90 = vmatprep.subr.mxu0 0.0
    %91 = vmatpush1.msra.mxu0 0.0
    %92 = vmatprep.subr.mxu0 0.0
    %93 = vmatpush1.msra.mxu0 %v62
    %94 = vmatprep.subr.mxu0 0.0
    %95 = vmatpush1.msra.mxu0 %v40
    %96 = vmatprep.subr.mxu0 0.0
    %97 = vmatpush2.msra.mxu0 0.0
    %98 = vmatprep.subr.mxu0 0.0
    %99 = vmatpush2.msra.mxu0 0.0
    %100 = vmatprep.subr.mxu0 0.0
    %101 = vmatpush2.msra.mxu0 0.0
    %102 = vmatprep.subr.mxu0 0.0
    %103 = vmatpush2.msra.mxu0 0.0
    %104 = vmatprep.subr.mxu0 0.0
    %105 = vmatpush2.msra.mxu0 0.0
    %106 = vmatprep.subr.mxu0 0.0
    %107 = vmatpush2.msra.mxu0 0.0
    %108 = vmatprep.subr.mxu0 0.0
    %109 = vmatpush2.msra.mxu0 0.0
    %110 = vmatprep.subr.mxu0 0.0
    %111 = vmatpush2.msra.mxu0 0.0
    %112 = vmatprep.subr.mxu0 0.0
    %113 = vmatpush2.msra.mxu0 0.0
    %114 = vmatprep.subr.mxu0 0.0
    %115 = vmatpush2.msra.mxu0 0.0
    %116 = vmatprep.subr.mxu0 0.0
    %117 = vmatpush2.msra.mxu0 0.0
    %118 = vmatprep.subr.mxu0 0.0
    %119 = vmatpush2.msra.mxu0 0.0
    %120 = vmatprep.subr.mxu0 0.0
    %121 = vmatpush2.msra.mxu0 0.0
    %122 = vmatprep.subr.mxu0 0.0
    %123 = vmatpush2.msra.mxu0 0.0
    %124 = vmatprep.subr.mxu0 0.0
    %125 = vmatpush2.msra.mxu0 0.0
    %126 = vmatprep.subr.mxu0 0.0
    %127 = vmatpush2.msra.mxu0 0.0
    %128 = vmatprep.mubr.f32.mxu0 0.0
    %129 = vmatmul.mubr.f32.gmra.mxu0 %v56
    %v130 = vpop.f32.mrf.mxu0
    %v131 = vadd.f32 %v48, %v130
    %v132 = vpop.f32.mrf.mxu0
    %133 = vmatprep.mubr.f32.mxu0 0.0
    %134 = vmatmul.mubr.f32.gmra.mxu0 %v58
    %v135 = vpop.f32.mrf.mxu0
    %v136 = vadd.f32 %v53, %v135
    %v137 = vpop.f32.mrf.mxu0
    %138 = vdwg.mxu0
    %v139 = vmax.f32 %v131, 0.0
    %v140 = vmax.f32 %v136, 0.0
    %142 = vset.pattern.permute.xlu0 10
    %143 = vperm.xlu0 %142, %v44
    %v144 = vpop.permute.xlu0 %143
    %v146 = vsel %vm55, %v44, 0
    %v149 = vsel %vm60, %v140, 0
    %151 = vmatprep.subr.mxu0 0.0
    %152 = vmatpush1.msra.mxu0 0.0
    %153 = vmatprep.subr.mxu0 0.0
    %154 = vmatpush1.msra.mxu0 0.0
    %155 = vmatprep.subr.mxu0 0.0
    %156 = vmatpush1.msra.mxu0 0.0
    %157 = vmatprep.subr.mxu0 0.0
    %158 = vmatpush1.msra.mxu0 0.0
    %159 = vmatprep.subr.mxu0 0.0
    %160 = vmatpush1.msra.mxu0 0.0
    %161 = vmatprep.subr.mxu0 0.0
    %162 = vmatpush1.msra.mxu0 0.0
    %163 = vmatprep.subr.mxu0 0.0
    %164 = vmatpush1.msra.mxu0 0.0
    %165 = vmatprep.subr.mxu0 0.0
    %166 = vmatpush1.msra.mxu0 0.0
    %167 = vmatprep.subr.mxu0 0.0
    %168 = vmatpush1.msra.mxu0 0.0
    %169 = vmatprep.subr.mxu0 0.0
    %170 = vmatpush1.msra.mxu0 0.0
    %171 = vmatprep.subr.mxu0 0.0
    %172 = vmatpush1.msra.mxu0 0.0
    %173 = vmatprep.subr.mxu0 0.0
    %174 = vmatpush1.msra.mxu0 0.0
    %175 = vmatprep.subr.mxu0 0.0
    %176 = vmatpush1.msra.mxu0 0.0
    %177 = vmatprep.subr.mxu0 0.0
    %178 = vmatpush1.msra.mxu0 0.0
    %179 = vmatprep.subr.mxu0 0.0
    %180 = vmatpush1.msra.mxu0 %v149
    %181 = vmatprep.subr.mxu0 0.0
    %182 = vmatpush1.msra.mxu0 %v139
    %183 = vmatprep.subr.mxu0 0.0
    %184 = vmatpush2.msra.mxu0 0.0
    %185 = vmatprep.subr.mxu0 0.0
    %186 = vmatpush2.msra.mxu0 0.0
    %187 = vmatprep.subr.mxu0 0.0
    %188 = vmatpush2.msra.mxu0 0.0
    %189 = vmatprep.subr.mxu0 0.0
    %190 = vmatpush2.msra.mxu0 0.0
    %191 = vmatprep.subr.mxu0 0.0
    %192 = vmatpush2.msra.mxu0 0.0
    %193 = vmatprep.subr.mxu0 0.0
    %194 = vmatpush2.msra.mxu0 0.0
    %195 = vmatprep.subr.mxu0 0.0
    %196 = vmatpush2.msra.mxu0 0.0
    %197 = vmatprep.subr.mxu0 0.0
    %198 = vmatpush2.msra.mxu0 0.0
    %199 = vmatprep.subr.mxu0 0.0
    %200 = vmatpush2.msra.mxu0 0.0
    %201 = vmatprep.subr.mxu0 0.0
    %202 = vmatpush2.msra.mxu0 0.0
    %203 = vmatprep.subr.mxu0 0.0
    %204 = vmatpush2.msra.mxu0 0.0
    %205 = vmatprep.subr.mxu0 0.0
    %206 = vmatpush2.msra.mxu0 0.0
    %207 = vmatprep.subr.mxu0 0.0
    %208 = vmatpush2.msra.mxu0 0.0
    %209 = vmatprep.subr.mxu0 0.0
    %210 = vmatpush2.msra.mxu0 0.0
    %211 = vmatprep.subr.mxu0 0.0
    %212 = vmatpush2.msra.mxu0 0.0
    %213 = vmatprep.subr.mxu0 0.0
    %214 = vmatpush2.msra.mxu0 0.0
    %215 = vmatprep.mubr.f32.mxu0 0.0
    %216 = vmatmul.mubr.f32.gmra.mxu0 %v146
    %v217 = vpop.f32.mrf.mxu0
    %v218 = vadd.f32 %v144, %v217
    %v219 = vpop.f32.mrf.mxu0
    %220 = vdwg.mxu0
    %221 = vst [vmem:[#allocation7] sm:$0x1f] %v218
    // Predicated region
    $region18: #{tpu_custom_call.1} parent=1 // pred_check
      _
    $region19: #{tpu_custom_call.1} parent=1 // pred_check_branch
      %223 = sbr.rel (0) target = $region21
    $region20: #{tpu_custom_call.1} parent=1 // pred_region
      %s225 = ssub.s32 128, 128
      %226 = vsyncadd [#allocation4], %s225
      %s228 = sshll.u32 [#allocation7], 4
      %s229 = int_to_ptr.vmem [resolvable:$true] %s228
      %231 = dma.vmem_to_hbm [thread:$0]  %s229, 128, %s2, [#allocation4]
    $region21: #{tpu_custom_call.1} parent=1 // pred_fallthru
      _
    // Predicated region
    $region22: #{tpu_custom_call.1} parent=1 // pred_check
      _
    $region23: #{tpu_custom_call.1} parent=1 // pred_check_branch
      %233 = sbr.rel (0) target = $region25
    $region24: #{tpu_custom_call.1} parent=1 // pred_region
      %234 = dma.done [#allocation4], 128
    $region25: #{tpu_custom_call.1} parent=1 // pred_fallthru
      _
    %235 = vsyncpa [#allocation3], 1
    %236 = vsyncpa [#allocation6], 1
    %237 = vsyncpa [#allocation4], 1

</llo_original>
